<compile_context>
chip_gen: v7x
topology: tpu7x:2x2x1
jax: 0.10.0
libtpu: 0.0.40
codegen_flags: <defaults>
</compile_context>

<pallas_src>
import math
import functools

import jax
import jax.numpy as jnp
from jax.experimental import pallas as pl
from jax.experimental.pallas import tpu as pltpu


# ---------------------------------------------------------------------------
# Kernel
# ---------------------------------------------------------------------------
def _sma_attention_kernel(*refs, has_mask, output_probs, qk_head, v_head,
                          compute_dtype):
    x_ref, gamma_ref, beta_ref, wq_ref, wk_ref, wv_ref, wo_ref = refs[:7]
    i = 7
    mask_ref = None
    if has_mask:
        mask_ref = refs[i]
        i += 1
    out_ref = refs[i]
    i += 1
    probs_ref = None
    if output_probs:
        probs_ref = refs[i]
        i += 1
    ln_scr, kt_scr, vt_scr, ctxt_scr = refs[i:i + 4]

    h = pl.program_id(1)
    last_h = pl.num_programs(1) - 1

    # ---- once per batch (h == 0): LayerNorm + full-width K / V projections.
    @pl.when(h == 0)
    def _():
        x = x_ref[0]                                            # (S, D) f32
        mu = jnp.mean(x, axis=-1, keepdims=True)
        xc = x - mu
        var = jnp.mean(xc * xc, axis=-1, keepdims=True)
        ln = xc * jax.lax.rsqrt(var + 1e-5) * gamma_ref[0] + beta_ref[0]
        ln_c = ln.astype(compute_dtype)
        ln_scr[...] = ln_c
        # K^T = Wk @ LN^T, V^T = Wv @ LN^T (contract last dims; wide MXU N = S).
        kt_scr[...] = jax.lax.dot_general(
            wk_ref[...], ln_c, (((1,), (1,)), ((), ())),
            preferred_element_type=jnp.float32).astype(kt_scr.dtype)
        vt_scr[...] = jax.lax.dot_general(
            wv_ref[...], ln_c, (((1,), (1,)), ((), ())),
            preferred_element_type=jnp.float32).astype(vt_scr.dtype)

    inv_sqrt_d = 1.0 / math.sqrt(qk_head)

    # Per-head query projection; 1/sqrt(d) folded into q (S*d_qk mults, not S*S).
    qh = jnp.dot(ln_scr[...], wq_ref[0], preferred_element_type=jnp.float32)
    qh = (qh * inv_sqrt_d).astype(compute_dtype)                # (S, d_qk)

    r_qk = pl.multiple_of(h * qk_head, qk_head)
    kh_t = kt_scr[pl.ds(r_qk, qk_head), :]                      # (d_qk, S)
    scores = jnp.dot(qh, kh_t, preferred_element_type=jnp.float32)   # (S, S)
    if has_mask:
        scores = scores + mask_ref[0, 0]                        # (1,S)/(S,S) bcast

    # numerically-stable softmax; exact reciprocal on the S row sums
    m = jnp.max(scores, axis=-1, keepdims=True)
    e = jnp.exp(scores - m)
    denom = jnp.sum(e, axis=-1, keepdims=True)
    probs = e * (1.0 / denom)
    if output_probs:
        probs_ref[0, 0] = probs.astype(probs_ref.dtype)

    # ctx^T = V_h^T @ probs^T  (contract the key axis); store-only, no RMW.
    r_v = pl.multiple_of(h * v_head, v_head)
    vh_t = vt_scr[pl.ds(r_v, v_head), :]                        # (d_v, S)
    ctx_t = jax.lax.dot_general(
        vh_t, probs.astype(compute_dtype), (((1,), (1,)), ((), ())),
        preferred_element_type=jnp.float32)                     # (d_v, S)
    ctxt_scr[pl.ds(r_v, v_head), :] = ctx_t.astype(ctxt_scr.dtype)

    # ---- last head: single K = v_channels output projection + query residual.
    @pl.when(h == last_h)
    def _():
        out = jax.lax.dot_general(
            ctxt_scr[...], wo_ref[...], (((0,), (0,)), ((), ())),
            preferred_element_type=jnp.float32)                 # (S, d_out)
        out_ref[0] = (out + x_ref[0]).astype(out_ref.dtype)


# ---------------------------------------------------------------------------
# Wrapper
# ---------------------------------------------------------------------------
def sma_attention(hidden_states, params, *, num_heads, attention_mask=None,
                  output_attentions=True, probs_dtype=jnp.float32):
    """SMAAttention forward (self-attention, eval, use_query_residual=True).

    hidden_states: (B, S, D) float32
    params: ln_gamma (D,), ln_beta (D,), wq (QK, D), wk (QK, D), wv (VC, D),
            wo (D_out, VC)   -- torch nn.Linear layout [out, in]
    attention_mask: optional additive mask, shape (B, S) / (B, Sq, S) /
                    (B, 1, Sq, S), broadcastable over queries.
    Returns: (layer_output (B, S, D_out), attention_probs (B, H, S, S) or None)
    """
    B, S, D = hidden_states.shape
    qk_channels, kv_dim = params["wk"].shape
    v_channels = params["wv"].shape[0]
    d_out = params["wo"].shape[0]
    assert params["wq"].shape == (qk_channels, D)
    assert params["wo"].shape == (d_out, v_channels)
    assert qk_channels % num_heads == 0 and v_channels % num_heads == 0
    assert d_out == D, "use_query_residual=True requires output_channels == q_dim"
    qk_head = qk_channels // num_heads
    v_head = v_channels // num_heads

    # bf16 MXU operands (f32 accumulation); fall back to f32 if head dims would
    # break bf16 sublane (16-row) alignment of the K^T / V^T / ctx^T row slices.
    compute_dtype = (jnp.bfloat16
                     if (qk_head % 16 == 0 and v_head % 16 == 0)
                     else jnp.float32)

    hidden_states = hidden_states.astype(jnp.float32)
    gamma = params["ln_gamma"].reshape(1, D).astype(jnp.float32)
    beta = params["ln_beta"].reshape(1, D).astype(jnp.float32)
    # Query weights head-split (H, D, d_qk): BlockSpec delivers one head/step.
    wq_heads = (params["wq"].reshape(num_heads, qk_head, D)
                .transpose(0, 2, 1).astype(compute_dtype))
    # K / V / O weights are whole-array inputs (constant index_map => DMA'd once).
    wk_full = params["wk"].astype(compute_dtype)                 # (QK, D)
    wv_full = params["wv"].astype(compute_dtype)                 # (VC, D)
    wo_t = params["wo"].T.astype(compute_dtype)                  # (VC, D_out)

    in_specs = [
        pl.BlockSpec((1, S, D), lambda b, h: (b, 0, 0)),             # x (per batch)
        pl.BlockSpec((1, D), lambda b, h: (0, 0)),                   # gamma
        pl.BlockSpec((1, D), lambda b, h: (0, 0)),                   # beta
        pl.BlockSpec((1, D, qk_head), lambda b, h: (h, 0, 0)),       # Wq head h
        pl.BlockSpec((qk_channels, kv_dim), lambda b, h: (0, 0)),    # Wk (whole)
        pl.BlockSpec((v_channels, kv_dim), lambda b, h: (0, 0)),     # Wv (whole)
        pl.BlockSpec((v_channels, d_out), lambda b, h: (0, 0)),      # Wo^T (whole)
    ]
    inputs = [hidden_states, gamma, beta, wq_heads, wk_full, wv_full, wo_t]

    has_mask = attention_mask is not None
    mq = 1
    if has_mask:
        mask = jnp.asarray(attention_mask, jnp.float32)
        if mask.ndim == 2:            # (B, S)
            mask = mask[:, None, None, :]
        elif mask.ndim == 3:          # (B, Sq, S)
            mask = mask[:, None, :, :]
        mq = mask.shape[2]
        # Natural shape kept: NOT expanded along the query axis.
        mask = jnp.broadcast_to(mask, (B, 1, mq, S))
        in_specs.append(pl.BlockSpec((1, 1, mq, S), lambda b, h: (b, 0, 0, 0)))
        inputs.append(mask)

    out_shapes = [jax.ShapeDtypeStruct((B, S, d_out), jnp.float32)]
    out_specs = [pl.BlockSpec((1, S, d_out), lambda b, h: (b, 0, 0))]
    if output_attentions:
        out_shapes.append(jax.ShapeDtypeStruct((B, num_heads, S, S), probs_dtype))
        out_specs.append(pl.BlockSpec((1, 1, S, S), lambda b, h: (b, h, 0, 0)))

    scratch_shapes = [
        pltpu.VMEM((S, D), compute_dtype),              # LayerNorm(x), per batch
        pltpu.VMEM((qk_channels, S), compute_dtype),    # K^T, all heads
        pltpu.VMEM((v_channels, S), compute_dtype),     # V^T, all heads
        pltpu.VMEM((v_channels, S), compute_dtype),     # ctx^T, all heads
    ]

    # Derived VMEM budget (no hard-coded limit); capped against device capacity.
    f32b = 4
    cb = jnp.dtype(compute_dtype).itemsize
    pb = jnp.dtype(probs_dtype).itemsize
    est = 0
    est += 2 * S * D * f32b                                      # x block (x2 buf)
    est += 4 * D * f32b                                          # gamma / beta
    est += 2 * D * qk_head * cb                                  # per-head Wq block
    est += 2 * ((qk_channels + v_channels) * kv_dim + v_channels * d_out) * cb
    est += 2 * S * d_out * f32b                                  # layer_output block
    if has_mask:
        est += 2 * mq * S * f32b
    if output_attentions:
        est += 2 * S * S * pb                                    # probs block
    est += (S * D + (qk_channels + 2 * v_channels) * S) * cb     # scratches
    est += 4 * S * S * f32b                                      # scores/exp temps
    est += 2 * S * max(qk_head, v_head) * (f32b + cb)            # qh / head slices
    try:
        vmem_cap = pltpu.get_tpu_info().vmem_capacity_bytes
    except Exception:
        vmem_cap = 64 * 1024 * 1024
    vmem_limit = int(min(max(1.25 * est + (2 << 20), 32 << 20), 0.9 * vmem_cap))

    kernel = functools.partial(
        _sma_attention_kernel, has_mask=has_mask, output_probs=output_attentions,
        qk_head=qk_head, v_head=v_head, compute_dtype=compute_dtype)

    # NOTE: the head axis must remain the innermost, sequential ("arbitrary")
    # grid axis -- the LN / K^T / V^T / ctx^T scratches carry across heads.
    res = pl.pallas_call(
        kernel,
        out_shape=out_shapes,
        grid_spec=pltpu.PrefetchScalarGridSpec(
            num_scalar_prefetch=0,
            grid=(B, num_heads),
            in_specs=in_specs,
            out_specs=out_specs,
            scratch_shapes=scratch_shapes),
        compiler_params=pltpu.CompilerParams(
            dimension_semantics=("parallel", "arbitrary"),
            vmem_limit_bytes=vmem_limit),
    )(*inputs)

    layer_out = res[0]
    probs = res[1] if output_attentions else None
    return layer_out, probs


# ---------------------------------------------------------------------------
# Plain-JAX reference (for correctness check)
# ---------------------------------------------------------------------------
def _reference(hidden_states, params, *, num_heads, attention_mask=None):
    B, S, D = hidden_states.shape
    x = hidden_states
    mu = jnp.mean(x, -1, keepdims=True)
    var = jnp.mean((x - mu) ** 2, -1, keepdims=True)
    ln = (x - mu) / jnp.sqrt(var + 1e-5) * params["ln_gamma"] + params["ln_beta"]

    q = ln @ params["wq"].T
    k = ln @ params["wk"].T
    v = ln @ params["wv"].T
    qk_head = params["wq"].shape[0] // num_heads
    v_head = params["wv"].shape[0] // num_heads

    def split(t, dh):
        return t.reshape(B, S, num_heads, dh).transpose(0, 2, 1, 3)

    qh, kh, vh = split(q, qk_head), split(k, qk_head), split(v, v_head)
    scores = jnp.einsum("bhqd,bhkd->bhqk", qh, kh) / math.sqrt(qk_head)
    if attention_mask is not None:
        scores = scores + attention_mask
    probs = jax.nn.softmax(scores, axis=-1)
    ctx = jnp.einsum("bhqk,bhkd->bhqd", probs, vh)
    ctx = ctx.transpose(0, 2, 1, 3).reshape(B, S, num_heads * v_head)
    out = ctx @ params["wo"].T + hidden_states
    return out, probs


# ---------------------------------------------------------------------------
if __name__ == "__main__":
    # Self-attention defaults: qk_channels = v_channels = q_dim,
    # output_channels = v_channels, bias=False, use_query_residual=True.
    B, S, D = 2, 8, 32
    NUM_HEADS = 2
    QK_CHANNELS = D
    V_CHANNELS = QK_CHANNELS
    D_OUT = V_CHANNELS

    key = jax.random.PRNGKey(0)
    keys = jax.random.split(key, 7)

    hidden_states = jax.random.normal(keys[0], (B, S, D), jnp.float32)

    params = {
        "ln_gamma": jnp.ones((D,), jnp.float32),
        "ln_beta": jnp.zeros((D,), jnp.float32),
        "wq": jax.random.normal(keys[1], (QK_CHANNELS, D), jnp.float32) * 0.05,
        "wk": jax.random.normal(keys[2], (QK_CHANNELS, D), jnp.float32) * 0.05,
        "wv": jax.random.normal(keys[3], (V_CHANNELS, D), jnp.float32) * 0.05,
        "wo": jax.random.normal(keys[4], (D_OUT, V_CHANNELS), jnp.float32) * 0.05,
    }

    ref_out, ref_probs = _reference(hidden_states, params, num_heads=NUM_HEADS)

    # --- no-mask path (mask never materialized / DMA'd) ---
    layer_out, attn_probs = sma_attention(hidden_states, params, num_heads=NUM_HEADS)
    jax.block_until_ready((layer_out, attn_probs))
    # tolerances account for bf16 MXU operands (f32 accumulation)
    assert jnp.allclose(layer_out, ref_out, atol=1e-2, rtol=1e-2)
    assert jnp.allclose(attn_probs, ref_probs, atol=3e-3, rtol=3e-3)

    # --- additive-mask path, natural (B, 1, 1, S) shape ---
    pad = (jax.random.uniform(keys[5], (B, 1, 1, S)) > 0.2).astype(jnp.float32)
    add_mask = (1.0 - pad) * -1e9                      # inverted-attention-mask style
    layer_out_m, attn_probs_m = sma_attention(
        hidden_states, params, num_heads=NUM_HEADS, attention_mask=add_mask
    )
    jax.block_until_ready((layer_out_m, attn_probs_m))
    ref_out_m, ref_probs_m = _reference(
        hidden_states, params, num_heads=NUM_HEADS, attention_mask=add_mask
    )
    assert jnp.allclose(layer_out_m, ref_out_m, atol=1e-2, rtol=1e-2)
    assert jnp.allclose(attn_probs_m, ref_probs_m, atol=3e-3, rtol=3e-3)

    # --- probs-skipped path (removes the dominant HBM write entirely) ---
    layer_out_np, probs_none = sma_attention(
        hidden_states, params, num_heads=NUM_HEADS, output_attentions=False
    )
    jax.block_until_ready(layer_out_np)
    assert probs_none is None
    assert jnp.allclose(layer_out_np, ref_out, atol=1e-2, rtol=1e-2)

    print("KERNEL_OK")
</pallas_src>

<mosaic_0001>
module attributes {stable_mosaic.version = 11 : i64} {
  func.func @_sma_attention_kernel(%arg0: i32, %arg1: i32, %arg2: memref<1x8x32xf32, #tpu.memory_space<vmem>>, %arg3: memref<1x32xf32, #tpu.memory_space<vmem>>, %arg4: memref<1x32xf32, #tpu.memory_space<vmem>>, %arg5: memref<1x32x16xbf16, #tpu.memory_space<vmem>>, %arg6: memref<32x32xbf16, #tpu.memory_space<vmem>>, %arg7: memref<32x32xbf16, #tpu.memory_space<vmem>>, %arg8: memref<32x32xbf16, #tpu.memory_space<vmem>>, %arg9: memref<1x8x32xf32, #tpu.memory_space<vmem>>, %arg10: memref<1x1x8x8xf32, #tpu.memory_space<vmem>>, %arg11: memref<8x32xbf16, #tpu.memory_space<vmem>>, %arg12: memref<32x8xbf16, #tpu.memory_space<vmem>>, %arg13: memref<32x8xbf16, #tpu.memory_space<vmem>>, %arg14: memref<32x8xbf16, #tpu.memory_space<vmem>>) attributes {dimension_semantics = [#tpu.dimension_semantics<parallel>, #tpu.dimension_semantics<arbitrary>], iteration_bounds = array<i64: 2, 2>, scalar_prefetch = 0 : i64, scratch_operands = 4 : i64, tpu.core_type = #tpu.core_type<tc>, window_params = [{transform_indices = @transform_0, window_bounds = array<i64: 1, 8, 32>}, {pipeline_mode = #tpu.pipeline_mode<synchronous>, transform_indices = @transform_1, window_bounds = array<i64: 1, 32>}, {pipeline_mode = #tpu.pipeline_mode<synchronous>, transform_indices = @transform_2, window_bounds = array<i64: 1, 32>}, {transform_indices = @transform_3, window_bounds = array<i64: 1, 32, 16>}, {pipeline_mode = #tpu.pipeline_mode<synchronous>, transform_indices = @transform_4, window_bounds = array<i64: 32, 32>}, {pipeline_mode = #tpu.pipeline_mode<synchronous>, transform_indices = @transform_5, window_bounds = array<i64: 32, 32>}, {pipeline_mode = #tpu.pipeline_mode<synchronous>, transform_indices = @transform_6, window_bounds = array<i64: 32, 32>}, {transform_indices = @transform_7, window_bounds = array<i64: 1, 8, 32>}, {transform_indices = @transform_8, window_bounds = array<i64: 1, 1, 8, 8>}]} {
    %c0_i32 = arith.constant 0 : i32
    %0 = arith.cmpi eq, %arg1, %c0_i32 : i32
    %1 = arith.extui %0 : i1 to i32
    %c0_i32_0 = arith.constant 0 : i32
    %2 = arith.cmpi ne, %1, %c0_i32_0 : i32
    scf.if %2 {
      %c0_20 = arith.constant 0 : index
      %c0_21 = arith.constant 0 : index
      %c0_22 = arith.constant 0 : index
      %41 = vector.load %arg2[%c0_20, %c0_21, %c0_22] : memref<1x8x32xf32, #tpu.memory_space<vmem>>, vector<1x8x32xf32>
      %42 = vector.shape_cast %41 : vector<1x8x32xf32> to vector<8x32xf32>
      %cst_23 = arith.constant dense<0.000000e+00> : vector<8xf32>
      %43 = vector.multi_reduction <add>, %42, %cst_23 [1] : vector<8x32xf32> to vector<8xf32>
      %44 = vector.shape_cast %43 : vector<8xf32> to vector<8x1xf32>
      %cst_24 = arith.constant 3.200000e+01 : f32
      %45 = vector.broadcast %cst_24 : f32 to vector<8x1xf32>
      %46 = arith.divf %44, %45 : vector<8x1xf32>
      %47 = vector.broadcast %46 : vector<8x1xf32> to vector<8x32xf32>
      %48 = arith.subf %42, %47 : vector<8x32xf32>
      %49 = arith.mulf %48, %48 : vector<8x32xf32>
      %cst_25 = arith.constant dense<0.000000e+00> : vector<8xf32>
      %50 = vector.multi_reduction <add>, %49, %cst_25 [1] : vector<8x32xf32> to vector<8xf32>
      %51 = vector.shape_cast %50 : vector<8xf32> to vector<8x1xf32>
      %cst_26 = arith.constant 3.200000e+01 : f32
      %52 = vector.broadcast %cst_26 : f32 to vector<8x1xf32>
      %53 = arith.divf %51, %52 : vector<8x1xf32>
      %cst_27 = arith.constant 9.99999974E-6 : f32
      %54 = vector.broadcast %cst_27 : f32 to vector<8x1xf32>
      %55 = arith.addf %53, %54 : vector<8x1xf32>
      %56 = math.rsqrt %55 : vector<8x1xf32>
      %57 = vector.broadcast %56 : vector<8x1xf32> to vector<8x32xf32>
      %58 = arith.mulf %48, %57 : vector<8x32xf32>
      %c0_28 = arith.constant 0 : index
      %c0_29 = arith.constant 0 : index
      %59 = vector.load %arg3[%c0_28, %c0_29] : memref<1x32xf32, #tpu.memory_space<vmem>>, vector<1x32xf32>
      %60 = vector.shape_cast %59 : vector<1x32xf32> to vector<32xf32>
      %61 = vector.shape_cast %60 : vector<32xf32> to vector<1x32xf32>
      %62 = vector.broadcast %61 : vector<1x32xf32> to vector<8x32xf32>
      %63 = arith.mulf %58, %62 : vector<8x32xf32>
      %c0_30 = arith.constant 0 : index
      %c0_31 = arith.constant 0 : index
      %64 = vector.load %arg4[%c0_30, %c0_31] : memref<1x32xf32, #tpu.memory_space<vmem>>, vector<1x32xf32>
      %65 = vector.shape_cast %64 : vector<1x32xf32> to vector<32xf32>
      %66 = vector.shape_cast %65 : vector<32xf32> to vector<1x32xf32>
      %67 = vector.broadcast %66 : vector<1x32xf32> to vector<8x32xf32>
      %68 = arith.addf %63, %67 : vector<8x32xf32>
      %69 = arith.truncf %68 : vector<8x32xf32> to vector<8x32xbf16>
      %c0_32 = arith.constant 0 : index
      %c0_33 = arith.constant 0 : index
      %70 = vector.load %arg11[%c0_32, %c0_33] : memref<8x32xbf16, #tpu.memory_space<vmem>>, vector<8x32xbf16>
      tpu.vector_store %arg11[%c0_32, %c0_33], %69 {strides = array<i32>} : memref<8x32xbf16, #tpu.memory_space<vmem>>, vector<8x32xbf16>,
      %c0_34 = arith.constant 0 : index
      %c0_35 = arith.constant 0 : index
      %71 = vector.load %arg6[%c0_34, %c0_35] : memref<32x32xbf16, #tpu.memory_space<vmem>>, vector<32x32xbf16>
      %cst_36 = arith.constant dense<0.000000e+00> : vector<32x8xf32>
      %72 = tpu.matmul %71, %69, %cst_36 {dimension_numbers = #tpu.dot_dimension_numbers<[1], [1], [0], [0], [0, 0, 1, 0], [], []>} : vector<32x32xbf16>, vector<8x32xbf16>, vector<32x8xf32> -> vector<32x8xf32>
      %73 = arith.truncf %72 : vector<32x8xf32> to vector<32x8xbf16>
      %c0_37 = arith.constant 0 : index
      %c0_38 = arith.constant 0 : index
      %74 = vector.load %arg12[%c0_37, %c0_38] : memref<32x8xbf16, #tpu.memory_space<vmem>>, vector<32x8xbf16>
      tpu.vector_store %arg12[%c0_37, %c0_38], %73 {strides = array<i32>} : memref<32x8xbf16, #tpu.memory_space<vmem>>, vector<32x8xbf16>,
      %c0_39 = arith.constant 0 : index
      %c0_40 = arith.constant 0 : index
      %75 = vector.load %arg7[%c0_39, %c0_40] : memref<32x32xbf16, #tpu.memory_space<vmem>>, vector<32x32xbf16>
      %cst_41 = arith.constant dense<0.000000e+00> : vector<32x8xf32>
      %76 = tpu.matmul %75, %69, %cst_41 {dimension_numbers = #tpu.dot_dimension_numbers<[1], [1], [0], [0], [0, 0, 1, 0], [], []>} : vector<32x32xbf16>, vector<8x32xbf16>, vector<32x8xf32> -> vector<32x8xf32>
      %77 = arith.truncf %76 : vector<32x8xf32> to vector<32x8xbf16>
      %c0_42 = arith.constant 0 : index
      %c0_43 = arith.constant 0 : index
      %78 = vector.load %arg13[%c0_42, %c0_43] : memref<32x8xbf16, #tpu.memory_space<vmem>>, vector<32x8xbf16>
      tpu.vector_store %arg13[%c0_42, %c0_43], %77 {strides = array<i32>} : memref<32x8xbf16, #tpu.memory_space<vmem>>, vector<32x8xbf16>,
    } else {
    }
    %c0 = arith.constant 0 : index
    %c0_1 = arith.constant 0 : index
    %3 = vector.load %arg11[%c0, %c0_1] : memref<8x32xbf16, #tpu.memory_space<vmem>>, vector<8x32xbf16>
    %c0_2 = arith.constant 0 : index
    %c0_3 = arith.constant 0 : index
    %c0_4 = arith.constant 0 : index
    %4 = vector.load %arg5[%c0_2, %c0_3, %c0_4] : memref<1x32x16xbf16, #tpu.memory_space<vmem>>, vector<1x32x16xbf16>
    %5 = vector.shape_cast %4 : vector<1x32x16xbf16> to vector<32x16xbf16>
    %cst = arith.constant dense<0.000000e+00> : vector<8x16xf32>
    %6 = tpu.matmul %3, %5, %cst {dimension_numbers = #tpu.dot_dimension_numbers<[1], [0], [0], [1], [0, 0, 1, 1], [], []>} : vector<8x32xbf16>, vector<32x16xbf16>, vector<8x16xf32> -> vector<8x16xf32>
    %cst_5 = arith.constant 2.500000e-01 : f32
    %7 = vector.broadcast %cst_5 : f32 to vector<8x16xf32>
    %8 = arith.mulf %6, %7 : vector<8x16xf32>
    %9 = arith.truncf %8 : vector<8x16xf32> to vector<8x16xbf16>
    %c16_i32 = arith.constant 16 : i32
    %10 = arith.muli %arg1, %c16_i32 : i32
    %11 = tpu.assume_multiple %10, 16 : i32
    %12 = arith.index_cast %11 : i32 to index
    %c0_6 = arith.constant 0 : index
    %13 = vector.load %arg12[%12, %c0_6] : memref<32x8xbf16, #tpu.memory_space<vmem>>, vector<16x8xbf16>
    %cst_7 = arith.constant dense<0.000000e+00> : vector<8x8xf32>
    %14 = tpu.matmul %9, %13, %cst_7 {dimension_numbers = #tpu.dot_dimension_numbers<[1], [0], [0], [1], [0, 0, 1, 1], [], []>} : vector<8x16xbf16>, vector<16x8xbf16>, vector<8x8xf32> -> vector<8x8xf32>
    %cst_8 = arith.constant dense<0xFF800000> : vector<8xf32>
    %15 = vector.multi_reduction <maximumf>, %14, %cst_8 [1] : vector<8x8xf32> to vector<8xf32>
    %16 = vector.shape_cast %15 : vector<8xf32> to vector<8x1xf32>
    %17 = vector.broadcast %16 : vector<8x1xf32> to vector<8x8xf32>
    %18 = arith.subf %14, %17 : vector<8x8xf32>
    %19 = math.exp %18 : vector<8x8xf32>
    %cst_9 = arith.constant dense<0.000000e+00> : vector<8xf32>
    %20 = vector.multi_reduction <add>, %19, %cst_9 [1] : vector<8x8xf32> to vector<8xf32>
    %21 = vector.shape_cast %20 : vector<8xf32> to vector<8x1xf32>
    %cst_10 = arith.constant 1.000000e+00 : f32
    %22 = vector.broadcast %cst_10 : f32 to vector<8x1xf32>
    %23 = arith.divf %22, %21 : vector<8x1xf32>
    %24 = vector.broadcast %23 : vector<8x1xf32> to vector<8x8xf32>
    %25 = arith.mulf %19, %24 : vector<8x8xf32>
    %c0_11 = arith.constant 0 : index
    %c0_12 = arith.constant 0 : index
    %c0_13 = arith.constant 0 : index
    %c0_14 = arith.constant 0 : index
    %26 = vector.load %arg10[%c0_11, %c0_12, %c0_13, %c0_14] : memref<1x1x8x8xf32, #tpu.memory_space<vmem>>, vector<1x1x8x8xf32>
    %27 = vector.shape_cast %26 : vector<1x1x8x8xf32> to vector<8x8xf32>
    %28 = vector.shape_cast %25 : vector<8x8xf32> to vector<1x1x8x8xf32>
    tpu.vector_store %arg10[%c0_11, %c0_12, %c0_13, %c0_14], %28 {strides = array<i32>} : memref<1x1x8x8xf32, #tpu.memory_space<vmem>>, vector<1x1x8x8xf32>,
    %c16_i32_15 = arith.constant 16 : i32
    %29 = arith.muli %arg1, %c16_i32_15 : i32
    %30 = tpu.assume_multiple %29, 16 : i32
    %31 = arith.index_cast %30 : i32 to index
    %c0_16 = arith.constant 0 : index
    %32 = vector.load %arg13[%31, %c0_16] : memref<32x8xbf16, #tpu.memory_space<vmem>>, vector<16x8xbf16>
    %33 = arith.truncf %25 : vector<8x8xf32> to vector<8x8xbf16>
    %cst_17 = arith.constant dense<0.000000e+00> : vector<16x8xf32>
    %34 = tpu.matmul %32, %33, %cst_17 {dimension_numbers = #tpu.dot_dimension_numbers<[1], [1], [0], [0], [0, 0, 1, 0], [], []>} : vector<16x8xbf16>, vector<8x8xbf16>, vector<16x8xf32> -> vector<16x8xf32>
    %35 = arith.truncf %34 : vector<16x8xf32> to vector<16x8xbf16>
    %36 = arith.index_cast %30 : i32 to index
    %c0_18 = arith.constant 0 : index
    %37 = vector.load %arg14[%36, %c0_18] : memref<32x8xbf16, #tpu.memory_space<vmem>>, vector<16x8xbf16>
    tpu.vector_store %arg14[%36, %c0_18], %35 {strides = array<i32>} : memref<32x8xbf16, #tpu.memory_space<vmem>>, vector<16x8xbf16>,
    %c1_i32 = arith.constant 1 : i32
    %38 = arith.cmpi eq, %arg1, %c1_i32 : i32
    %39 = arith.extui %38 : i1 to i32
    %c0_i32_19 = arith.constant 0 : i32
    %40 = arith.cmpi ne, %39, %c0_i32_19 : i32
    scf.if %40 {
      %c0_20 = arith.constant 0 : index
      %c0_21 = arith.constant 0 : index
      %41 = vector.load %arg14[%c0_20, %c0_21] : memref<32x8xbf16, #tpu.memory_space<vmem>>, vector<32x8xbf16>
      %c0_22 = arith.constant 0 : index
      %c0_23 = arith.constant 0 : index
      %42 = vector.load %arg8[%c0_22, %c0_23] : memref<32x32xbf16, #tpu.memory_space<vmem>>, vector<32x32xbf16>
      %cst_24 = arith.constant dense<0.000000e+00> : vector<8x32xf32>
      %43 = tpu.matmul %41, %42, %cst_24 {dimension_numbers = #tpu.dot_dimension_numbers<[0], [0], [1], [1], [0, 1, 1, 1], [], []>} : vector<32x8xbf16>, vector<32x32xbf16>, vector<8x32xf32> -> vector<8x32xf32>
      %c0_25 = arith.constant 0 : index
      %c0_26 = arith.constant 0 : index
      %c0_27 = arith.constant 0 : index
      %44 = vector.load %arg2[%c0_25, %c0_26, %c0_27] : memref<1x8x32xf32, #tpu.memory_space<vmem>>, vector<1x8x32xf32>
      %45 = vector.shape_cast %44 : vector<1x8x32xf32> to vector<8x32xf32>
      %46 = arith.addf %43, %45 : vector<8x32xf32>
      %c0_28 = arith.constant 0 : index
      %c0_29 = arith.constant 0 : index
      %c0_30 = arith.constant 0 : index
      %47 = vector.load %arg9[%c0_28, %c0_29, %c0_30] : memref<1x8x32xf32, #tpu.memory_space<vmem>>, vector<1x8x32xf32>
      %48 = vector.shape_cast %47 : vector<1x8x32xf32> to vector<8x32xf32>
      %49 = vector.shape_cast %46 : vector<8x32xf32> to vector<1x8x32xf32>
      tpu.vector_store %arg9[%c0_28, %c0_29, %c0_30], %49 {strides = array<i32>} : memref<1x8x32xf32, #tpu.memory_space<vmem>>, vector<1x8x32xf32>,
    } else {
    }
    return
  }
  func.func @transform_0(%arg0: i32, %arg1: i32) -> (i32, i32, i32) {
    %c0_i32 = arith.constant 0 : i32
    %c0_i32_0 = arith.constant 0 : i32
    %c0_i32_1 = arith.constant 0 : i32
    return %arg0, %c0_i32, %c0_i32_0 : i32, i32, i32
  }
  func.func @transform_1(%arg0: i32, %arg1: i32) -> (i32, i32) {
    %c0_i32 = arith.constant 0 : i32
    %c0_i32_0 = arith.constant 0 : i32
    %c0_i32_1 = arith.constant 0 : i32
    return %c0_i32, %c0_i32_0 : i32, i32
  }
  func.func @transform_2(%arg0: i32, %arg1: i32) -> (i32, i32) {
    %c0_i32 = arith.constant 0 : i32
    %c0_i32_0 = arith.constant 0 : i32
    %c0_i32_1 = arith.constant 0 : i32
    return %c0_i32, %c0_i32_0 : i32, i32
  }
  func.func @transform_3(%arg0: i32, %arg1: i32) -> (i32, i32, i32) {
    %c0_i32 = arith.constant 0 : i32
    %c0_i32_0 = arith.constant 0 : i32
    %c0_i32_1 = arith.constant 0 : i32
    return %arg1, %c0_i32, %c0_i32_0 : i32, i32, i32
  }
  func.func @transform_4(%arg0: i32, %arg1: i32) -> (i32, i32) {
    %c0_i32 = arith.constant 0 : i32
    %c0_i32_0 = arith.constant 0 : i32
    %c0_i32_1 = arith.constant 0 : i32
    return %c0_i32, %c0_i32_0 : i32, i32
  }
  func.func @transform_5(%arg0: i32, %arg1: i32) -> (i32, i32) {
    %c0_i32 = arith.constant 0 : i32
    %c0_i32_0 = arith.constant 0 : i32
    %c0_i32_1 = arith.constant 0 : i32
    return %c0_i32, %c0_i32_0 : i32, i32
  }
  func.func @transform_6(%arg0: i32, %arg1: i32) -> (i32, i32) {
    %c0_i32 = arith.constant 0 : i32
    %c0_i32_0 = arith.constant 0 : i32
    %c0_i32_1 = arith.constant 0 : i32
    return %c0_i32, %c0_i32_0 : i32, i32
  }
  func.func @transform_7(%arg0: i32, %arg1: i32) -> (i32, i32, i32) {
    %c0_i32 = arith.constant 0 : i32
    %c0_i32_0 = arith.constant 0 : i32
    %c0_i32_1 = arith.constant 0 : i32
    return %arg0, %c0_i32, %c0_i32_0 : i32, i32, i32
  }
  func.func @transform_8(%arg0: i32, %arg1: i32) -> (i32, i32, i32, i32) {
    %c0_i32 = arith.constant 0 : i32
    %c0_i32_0 = arith.constant 0 : i32
    %c0_i32_1 = arith.constant 0 : i32
    return %arg0, %arg1, %c0_i32, %c0_i32_0 : i32, i32, i32, i32
  }
}

</mosaic_0001>

<llo_original>
// kernel: tpu_custom_call.1
$region0: #{tpu_custom_call.1}
  #allocation0 [shape = 'u32[]', space=smem, size = 0x4, offset = 0x4, fixed_abs, tag = 'smem constant byte address 0x4 - core index']
  #allocation1 [shape = 'u32[144,128]{1,0:T(1,128)}', space=vmem, size = 0x12000, scoped, tag = 'internal scratch']
  #allocation2 [shape = 'bf16[8,32]{1,0:T(8,128)(2,1)}', space=vmem, size = 0x800, scoped, tag = 'scratch operand']
  #allocation3 [shape = 'bf16[32,8]{1,0:T(16,128)(2,1)}', space=vmem, size = 0x2000, scoped, tag = 'scratch operand']
  #allocation4 [shape = 'bf16[32,8]{1,0:T(16,128)(2,1)}', space=vmem, size = 0x2000, scoped, tag = 'scratch operand']
  #allocation5 [shape = 'bf16[32,8]{1,0:T(16,128)(2,1)}', space=vmem, size = 0x2000, scoped, tag = 'scratch operand']
  %s0 = inlined_call_operand.vmem [shape: f32[2,8,32], index: 0, kind: input, shape index: {}]
  %s1 = inlined_call_operand.vmem [shape: f32[1,32], index: 1, kind: input, shape index: {}]
  %s2 = inlined_call_operand.vmem [shape: f32[1,32], index: 2, kind: input, shape index: {}]
  %s3 = inlined_call_operand.vmem [shape: bf16[2,32,16], index: 3, kind: input, shape index: {}]
  %s4 = inlined_call_operand.vmem [shape: bf16[32,32], index: 4, kind: input, shape index: {}]
  %s5 = inlined_call_operand.vmem [shape: bf16[32,32], index: 5, kind: input, shape index: {}]
  %s6 = inlined_call_operand.vmem [shape: bf16[32,32], index: 6, kind: input, shape index: {}]
  %s7 = inlined_call_operand.hbm [shape: f32[2,8,32], index: 7, kind: output, shape index: {0}]
  %s8 = inlined_call_operand.hbm [shape: f32[2,2,8,8], index: 8, kind: output, shape index: {1}]
  %9 = xla_tuple %s7, %s8
  %s10 = sld [smem:[#allocation0]]
  $region77: #{tpu_custom_call.1} parent=0
    _
  %s12 = ssub.s32 1, %s10
  %s13 = scalar_select 0, %s12, %s10
  $region1: #{tpu_custom_call.1} parent=0
    #allocation6 [shape = 'u8[8192]{0}', space=vmem, size = 0x2000, scoped, tag = 'output window, operand 0']
    #allocation7 [shape = 's32[2]{0}', space=sflag, size = 0x8, scoped, tag = 'scoped memory for tpu_custom_call.1']
    #allocation8 [shape = 'u8[8192]{0}', space=vmem, size = 0x2000, scoped, tag = 'output window, operand 1']
    #allocation9 [shape = 's32[2]{0}', space=sflag, size = 0x8, scoped, tag = 'scoped memory for tpu_custom_call.1']
    %14 = vsyncpa [#allocation7], 0
    %s15 = scalar_lea.sflag [#allocation7], 1
    %16 = vsyncpa %s15, 0
    %17 = vsyncpa [#allocation9], 0
    %s18 = scalar_lea.sflag [#allocation9], 1
    %19 = vsyncpa %s18, 0
    loop: start=0, step=1, limit=6
    $region2: #{tpu_custom_call.1} parent=1 // loop_pre_header
      _
    $region3: #{tpu_custom_call.1} parent=1 // loop_header
      %s21 = sphi 0, %s25
      %p22 = scmp.ge.s32.totalorder %s21, 6
      %s28 = sphi 0, %s40
      %s29 = sphi 0, %s36
      %s30 = sphi 0, %s28
      %s31 = sphi 0, %s29
      %s32 = sphi 0, %s30
      %s33 = sphi 0, %s31
      %s43 = sphi 0, %s45
      %s46 = sphi 0, %s43
      %s47 = sphi 0, %s46
      %s63 = sphi 0, %s47
      %s67 = sphi 0, %s67
      %s69 = sphi 0, %s67
      %s70 = sphi 0, %s69
      %s84 = sphi 0, %s70
      %s88 = sphi 0, %s88
      %s90 = sphi 0, %s88
      %s91 = sphi 0, %s90
      %s105 = sphi 0, %s91
      %s111 = sphi 0, %s113
      %s114 = sphi 0, %s111
      %s115 = sphi 0, %s114
      %s131 = sphi 0, %s115
      %s135 = sphi 0, %s135
      %s137 = sphi 0, %s135
      %s138 = sphi 0, %s137
      %s152 = sphi 0, %s138
      %s156 = sphi 0, %s156
      %s158 = sphi 0, %s156
      %s159 = sphi 0, %s158
      %s173 = sphi 0, %s159
      %s177 = sphi 0, %s177
      %s179 = sphi 0, %s177
      %s180 = sphi 0, %s179
      %s194 = sphi 0, %s180
      %s200 = sphi 0, %s202
      %s203 = sphi 0, %s200
      %s204 = sphi 0, %s203
      %s220 = sphi 0, %s204
      %s228 = sphi 0, %s230
      %s231 = sphi 0, %s228
      %s232 = sphi 0, %s231
      %s248 = sphi 0, %s232
    $region4: #{tpu_custom_call.1} parent=1 // loop_header_branch
      %24 = sbr.rel (%p22) target = $region8
    $region5: #{tpu_custom_call.1} parent=1 // loop_body
      %s26 = ssub.s32 %s21, 1
      %s27 = ssub.s32 %s21, 2
      %s34 = sadd.s32 1, %s29
      %p35 = scmp.ge.s32.totalorder %s34, 2
      %s36 = scalar_select %p35, 0, %s34
      %s37 = sadd.s32 1, %s28
      %s38 = scalar_select %p35, %s37, %s28
      %p39 = scmp.ge.s32.totalorder %s38, 2
      %s40 = scalar_select %p39, 0, %s38
      %s41 = ssub.s32 %s28, %s40
      %p42 = scmp.eq.s32.totalorder %s41, 0
      %s44 = sadd.s32 %s43, 1
      %s45 = scalar_select %p42, %s43, %s44
      %p48 = pneg %p42
      %p49 = scmp.eq.s32.totalorder %s21, 3
      %p50 = por %p48, %p49
      %p51 = scmp.ne.s32.totalorder %s43, %s46
      %p52 = scmp.eq.s32.totalorder %s21, 0
      %p53 = por %p51, %p52
      %p54 = scmp.ne.s32.totalorder %s43, %s46
      %p55 = scmp.eq.s32.totalorder %s26, 3
      %p56 = por %p54, %p55
      %p57 = scmp.ne.s32.totalorder %s46, %s47
      %p58 = scmp.eq.s32.totalorder %s26, 0
      %p59 = por %p57, %p58
      %p60 = scmp.ne.s32.totalorder %s46, %s47
      %p61 = scmp.eq.s32.totalorder %s27, 3
      %p62 = por %p60, %p61
      %p64 = scmp.ne.s32.totalorder %s47, %s63
      %p65 = scmp.eq.s32.totalorder %s27, 0
      %p66 = por %p64, %p65
      %s68 = sadd.s32 %s67, 1
      %p71 = scmp.eq.s32.totalorder %s21, 3
      %p72 = scmp.ne.s32.totalorder %s67, %s69
      %p73 = scmp.eq.s32.totalorder %s21, 0
      %p74 = por %p72, %p73
      %p75 = scmp.ne.s32.totalorder %s67, %s69
      %p76 = scmp.eq.s32.totalorder %s26, 3
      %p77 = por %p75, %p76
      %p78 = scmp.ne.s32.totalorder %s69, %s70
      %p79 = scmp.eq.s32.totalorder %s26, 0
      %p80 = por %p78, %p79
      %p81 = scmp.ne.s32.totalorder %s69, %s70
      %p82 = scmp.eq.s32.totalorder %s27, 3
      %p83 = por %p81, %p82
      %p85 = scmp.ne.s32.totalorder %s70, %s84
      %p86 = scmp.eq.s32.totalorder %s27, 0
      %p87 = por %p85, %p86
      %s89 = sadd.s32 %s88, 1
      %p92 = scmp.eq.s32.totalorder %s21, 3
      %p93 = scmp.ne.s32.totalorder %s88, %s90
      %p94 = scmp.eq.s32.totalorder %s21, 0
      %p95 = por %p93, %p94
      %p96 = scmp.ne.s32.totalorder %s88, %s90
      %p97 = scmp.eq.s32.totalorder %s26, 3
      %p98 = por %p96, %p97
      %p99 = scmp.ne.s32.totalorder %s90, %s91
      %p100 = scmp.eq.s32.totalorder %s26, 0
      %p101 = por %p99, %p100
      %p102 = scmp.ne.s32.totalorder %s90, %s91
      %p103 = scmp.eq.s32.totalorder %s27, 3
      %p104 = por %p102, %p103
      %p106 = scmp.ne.s32.totalorder %s91, %s105
      %p107 = scmp.eq.s32.totalorder %s27, 0
      %p108 = por %p106, %p107
      %s109 = ssub.s32 %s29, %s36
      %p110 = scmp.eq.s32.totalorder %s109, 0
      %s112 = sadd.s32 %s111, 1
      %s113 = scalar_select %p110, %s111, %s112
      %p116 = pneg %p110
      %p117 = scmp.eq.s32.totalorder %s21, 3
      %p118 = por %p116, %p117
      %p119 = scmp.ne.s32.totalorder %s111, %s114
      %p120 = scmp.eq.s32.totalorder %s21, 0
      %p121 = por %p119, %p120
      %p122 = scmp.ne.s32.totalorder %s111, %s114
      %p123 = scmp.eq.s32.totalorder %s26, 3
      %p124 = por %p122, %p123
      %p125 = scmp.ne.s32.totalorder %s114, %s115
      %p126 = scmp.eq.s32.totalorder %s26, 0
      %p127 = por %p125, %p126
      %p128 = scmp.ne.s32.totalorder %s114, %s115
      %p129 = scmp.eq.s32.totalorder %s27, 3
      %p130 = por %p128, %p129
      %p132 = scmp.ne.s32.totalorder %s115, %s131
      %p133 = scmp.eq.s32.totalorder %s27, 0
      %p134 = por %p132, %p133
      %s136 = sadd.s32 %s135, 1
      %p139 = scmp.eq.s32.totalorder %s21, 3
      %p140 = scmp.ne.s32.totalorder %s135, %s137
      %p141 = scmp.eq.s32.totalorder %s21, 0
      %p142 = por %p140, %p141
      %p143 = scmp.ne.s32.totalorder %s135, %s137
      %p144 = scmp.eq.s32.totalorder %s26, 3
      %p145 = por %p143, %p144
      %p146 = scmp.ne.s32.totalorder %s137, %s138
      %p147 = scmp.eq.s32.totalorder %s26, 0
      %p148 = por %p146, %p147
      %p149 = scmp.ne.s32.totalorder %s137, %s138
      %p150 = scmp.eq.s32.totalorder %s27, 3
      %p151 = por %p149, %p150
      %p153 = scmp.ne.s32.totalorder %s138, %s152
      %p154 = scmp.eq.s32.totalorder %s27, 0
      %p155 = por %p153, %p154
      %s157 = sadd.s32 %s156, 1
      %p160 = scmp.eq.s32.totalorder %s21, 3
      %p161 = scmp.ne.s32.totalorder %s156, %s158
      %p162 = scmp.eq.s32.totalorder %s21, 0
      %p163 = por %p161, %p162
      %p164 = scmp.ne.s32.totalorder %s156, %s158
      %p165 = scmp.eq.s32.totalorder %s26, 3
      %p166 = por %p164, %p165
      %p167 = scmp.ne.s32.totalorder %s158, %s159
      %p168 = scmp.eq.s32.totalorder %s26, 0
      %p169 = por %p167, %p168
      %p170 = scmp.ne.s32.totalorder %s158, %s159
      %p171 = scmp.eq.s32.totalorder %s27, 3
      %p172 = por %p170, %p171
      %p174 = scmp.ne.s32.totalorder %s159, %s173
      %p175 = scmp.eq.s32.totalorder %s27, 0
      %p176 = por %p174, %p175
      %s178 = sadd.s32 %s177, 1
      %p181 = scmp.eq.s32.totalorder %s21, 3
      %p182 = scmp.ne.s32.totalorder %s177, %s179
      %p183 = scmp.eq.s32.totalorder %s21, 0
      %p184 = por %p182, %p183
      %p185 = scmp.ne.s32.totalorder %s177, %s179
      %p186 = scmp.eq.s32.totalorder %s26, 3
      %p187 = por %p185, %p186
      %p188 = scmp.ne.s32.totalorder %s179, %s180
      %p189 = scmp.eq.s32.totalorder %s26, 0
      %p190 = por %p188, %p189
      %p191 = scmp.ne.s32.totalorder %s179, %s180
      %p192 = scmp.eq.s32.totalorder %s27, 3
      %p193 = por %p191, %p192
      %p195 = scmp.ne.s32.totalorder %s180, %s194
      %p196 = scmp.eq.s32.totalorder %s27, 0
      %p197 = por %p195, %p196
      %s198 = ssub.s32 %s28, %s40
      %p199 = scmp.eq.s32.totalorder %s198, 0
      %s201 = sadd.s32 %s200, 1
      %s202 = scalar_select %p199, %s200, %s201
      %p205 = pneg %p199
      %p206 = scmp.eq.s32.totalorder %s21, 3
      %p207 = por %p205, %p206
      %p208 = scmp.ne.s32.totalorder %s200, %s203
      %p209 = scmp.eq.s32.totalorder %s21, 0
      %p210 = por %p208, %p209
      %p211 = scmp.ne.s32.totalorder %s200, %s203
      %p212 = scmp.eq.s32.totalorder %s26, 3
      %p213 = por %p211, %p212
      %p214 = scmp.ne.s32.totalorder %s203, %s204
      %p215 = scmp.eq.s32.totalorder %s26, 0
      %p216 = por %p214, %p215
      %p217 = scmp.ne.s32.totalorder %s203, %s204
      %p218 = scmp.eq.s32.totalorder %s27, 3
      %p219 = por %p217, %p218
      %p221 = scmp.ne.s32.totalorder %s204, %s220
      %p222 = scmp.eq.s32.totalorder %s27, 0
      %p223 = por %p221, %p222
      %s224 = ssub.s32 %s28, %s40
      %s225 = ssub.s32 %s29, %s36
      %s226 = sor.u32 %s224, %s225
      %p227 = scmp.eq.s32.totalorder %s226, 0
      %s229 = sadd.s32 %s228, 1
      %s230 = scalar_select %p227, %s228, %s229
      %p233 = pneg %p227
      %p234 = scmp.eq.s32.totalorder %s21, 3
      %p235 = por %p233, %p234
      %p236 = scmp.ne.s32.totalorder %s228, %s231
      %p237 = scmp.eq.s32.totalorder %s21, 0
      %p238 = por %p236, %p237
      %p239 = scmp.ne.s32.totalorder %s228, %s231
      %p240 = scmp.eq.s32.totalorder %s26, 3
      %p241 = por %p239, %p240
      %p242 = scmp.ne.s32.totalorder %s231, %s232
      %p243 = scmp.eq.s32.totalorder %s26, 0
      %p244 = por %p242, %p243
      %p245 = scmp.ne.s32.totalorder %s231, %s232
      %p246 = scmp.eq.s32.totalorder %s27, 3
      %p247 = por %p245, %p246
      %p249 = scmp.ne.s32.totalorder %s232, %s248
      %p250 = scmp.eq.s32.totalorder %s27, 0
      %p251 = por %p249, %p250
      %p252 = scmp.le.s32.totalorder 1, %s21
      %p253 = scmp.lt.s32.totalorder %s21, 5
      %p254 = pnand %p252, %p253
      %p255 = pneg %p254
      // Predicated region
      $region9: #{tpu_custom_call.1} parent=5 // pred_check
        _
      $region10: #{tpu_custom_call.1} parent=5 // pred_check_branch
        %257 = sbr.rel (%p254) target = $region12
      $region11: #{tpu_custom_call.1} parent=5 // pred_region
        %s258 = ssub.s32 %s21, 1
        // Predicated region
        $region13: #{tpu_custom_call.1} parent=11 // pred_check
          %p259 = pneg %p80
        $region14: #{tpu_custom_call.1} parent=11 // pred_check_branch
          %261 = sbr.rel (%p259) target = $region16
        $region15: #{tpu_custom_call.1} parent=11 // pred_region
          _
        $region16: #{tpu_custom_call.1} parent=11 // pred_fallthru
          _
        // Predicated region
        $region17: #{tpu_custom_call.1} parent=11 // pred_check
          %p262 = pneg %p101
        $region18: #{tpu_custom_call.1} parent=11 // pred_check_branch
          %264 = sbr.rel (%p262) target = $region20
        $region19: #{tpu_custom_call.1} parent=11 // pred_region
          _
        $region20: #{tpu_custom_call.1} parent=11 // pred_fallthru
          _
        // Predicated region
        $region21: #{tpu_custom_call.1} parent=11 // pred_check
          %p265 = pneg %p148
        $region22: #{tpu_custom_call.1} parent=11 // pred_check_branch
          %267 = sbr.rel (%p265) target = $region24
        $region23: #{tpu_custom_call.1} parent=11 // pred_region
          _
        $region24: #{tpu_custom_call.1} parent=11 // pred_fallthru
          _
        // Predicated region
        $region25: #{tpu_custom_call.1} parent=11 // pred_check
          %p268 = pneg %p169
        $region26: #{tpu_custom_call.1} parent=11 // pred_check_branch
          %270 = sbr.rel (%p268) target = $region28
        $region27: #{tpu_custom_call.1} parent=11 // pred_region
          _
        $region28: #{tpu_custom_call.1} parent=11 // pred_fallthru
          _
        // Predicated region
        $region29: #{tpu_custom_call.1} parent=11 // pred_check
          %p271 = pneg %p190
        $region30: #{tpu_custom_call.1} parent=11 // pred_check_branch
          %273 = sbr.rel (%p271) target = $region32
        $region31: #{tpu_custom_call.1} parent=11 // pred_region
          _
        $region32: #{tpu_custom_call.1} parent=11 // pred_fallthru
          _
      $region12: #{tpu_custom_call.1} parent=5 // pred_fallthru
        _
      %p274 = scmp.lt.s32.totalorder %s21, 4
      // Predicated region
      $region33: #{tpu_custom_call.1} parent=5 // pred_check
        %p275 = pneg %p274
      $region34: #{tpu_custom_call.1} parent=5 // pred_check_branch
        %277 = sbr.rel (%p275) target = $region36
      $region35: #{tpu_custom_call.1} parent=5 // pred_region
        // Predicated region
        $region37: #{tpu_custom_call.1} parent=35 // pred_check
          %p278 = pneg %p53
        $region38: #{tpu_custom_call.1} parent=35 // pred_check_branch
          %280 = sbr.rel (%p278) target = $region40
        $region39: #{tpu_custom_call.1} parent=35 // pred_region
          %p281 = scmp.lt.s32.totalorder %s28, 1
          %s282 = scalar_select %p281, %s28, 1
          %s283 = smul.addr %s282, 8
          %s284 = scalar_lea.vmem %s0, %s283
        $region40: #{tpu_custom_call.1} parent=35 // pred_fallthru
          _
        // Predicated region
        $region41: #{tpu_custom_call.1} parent=35 // pred_check
          %p285 = pneg %p121
        $region42: #{tpu_custom_call.1} parent=35 // pred_check_branch
          %287 = sbr.rel (%p285) target = $region44
        $region43: #{tpu_custom_call.1} parent=35 // pred_region
          %p288 = scmp.lt.s32.totalorder %s29, 1
          %s289 = scalar_select %p288, %s29, 1
          %s290 = smul.addr %s289, 4
          %s291 = smul.addr %s290, 4
          %s292 = scalar_lea.vmem %s3, %s291
        $region44: #{tpu_custom_call.1} parent=35 // pred_fallthru
          _
      $region36: #{tpu_custom_call.1} parent=5 // pred_fallthru
        _
      %p293 = scmp.le.s32.totalorder 1, %s21
      %p294 = scmp.lt.s32.totalorder %s21, 5
      %p295 = pnand %p293, %p294
      %p296 = pneg %p295
      // Predicated region
      $region45: #{tpu_custom_call.1} parent=5 // pred_check
        _
      $region46: #{tpu_custom_call.1} parent=5 // pred_check_branch
        %298 = sbr.rel (%p295) target = $region48
      $region47: #{tpu_custom_call.1} parent=5 // pred_region
        %s299 = ssub.s32 %s21, 1
        %p300 = scmp.lt.s32.totalorder %s30, 1
        %s301 = scalar_select %p300, %s30, 1
        %s302 = smul.addr %s301, 8
        %s303 = scalar_lea.vmem %s0, %s302
        %p304 = pneg %p59
        %p305 = pneg %p56
        %p306 = pneg %p80
        %p307 = pneg %p77
        %p308 = pneg %p101
        %p309 = pneg %p98
        %p310 = scmp.lt.s32.totalorder %s31, 1
        %s311 = scalar_select %p310, %s31, 1
        %s312 = smul.addr %s311, 4
        %s313 = smul.addr %s312, 4
        %s314 = scalar_lea.vmem %s3, %s313
        %p315 = pneg %p127
        %p316 = pneg %p124
        %p317 = pneg %p148
        %p318 = pneg %p145
        %p319 = pneg %p169
        %p320 = pneg %p166
        %p321 = pneg %p190
        %p322 = pneg %p187
        %p323 = pneg %p216
        %p324 = pneg %p213
        %s325 = sand.u32 %s203, 1
        %s326 = scalar_lea.sflag [#allocation7], %s325
        %s327 = sand.u32 %s203, 1
        %s328 = smul.addr %s327, 8
        %s329 = scalar_lea.vmem [#allocation6], %s328
        %p330 = pneg %p244
        %p331 = pneg %p241
        %s332 = sand.u32 %s231, 1
        %s333 = scalar_lea.sflag [#allocation9], %s332
        %s334 = sand.u32 %s231, 1
        %s335 = smul.addr %s334, 8
        %s336 = scalar_lea.vmem [#allocation8], %s335
        %p337 = scmp.lt.s32.totalorder %s30, 1
        %s338 = scalar_select %p337, %s30, 1
        %s339 = smul.addr %s338, 8
        %s340 = scalar_lea.vmem %s0, %s339
        %p341 = scmp.lt.s32.totalorder %s31, 1
        %s342 = scalar_select %p341, %s31, 1
        %s343 = smul.addr %s342, 4
        %s344 = smul.addr %s343, 4
        %s345 = scalar_lea.vmem %s3, %s344
        %p347 = scmp.eq.s32.totalorder %s31, 0
        // Predicated region
        $region49: #{tpu_custom_call.1} parent=47 // pred_check
          %p348 = pneg %p347
        $region50: #{tpu_custom_call.1} parent=47 // pred_check_branch
          %350 = sbr.rel (%p348) target = $region52
        $region51: #{tpu_custom_call.1} parent=47 // pred_region
          %v351 = vld [vmem:[%s340] sm:$0xff]
          %vm352 = vcmask 261120
          %v353 = vsel %vm352, %v351, 0.0
          %354 = vadd.xlane.f32.xlu0 %v353
          %v355 = vpop.xlane.xlu0 %354
          %v356 = vrcp.pop 32.0
          %v357 = vmul.f32 %v355, %v356
          %v358 = vsub.f32 %v351, %v357
          %v359 = vmul.f32 %v358, %v358
          %v360 = vsel %vm352, %v359, 0.0
          %361 = vadd.xlane.f32.xlu0 %v360
          %v362 = vpop.xlane.xlu0 %361
          %v363 = vmul.f32 %v362, %v356
          %v364 = vadd.f32 %v363, 1e-05
          %v365 = vrsqrt.pop %v364
          %v366 = vmul.f32 %v358, %v365
          %v367 = vld [vmem:[%s1] sm:$0x1]
          %v369 = vlaneseq
          %v370 = vshrl.u32 %v369, 7
          %v371 = vsub.s32 0, %v370
          %v372 = vrot.slane %v367, %v371
          %v374 = vmul.f32 %v366, %v372
          %v375 = vld [vmem:[%s2] sm:$0x1]
          %v377 = vlaneseq
          %v378 = vshrl.u32 %v377, 7
          %v379 = vsub.s32 0, %v378
          %v380 = vrot.slane %v375, %v379
          %v382 = vadd.f32 %v374, %v380
          %v383 = vpack.c.bf16 %v382, %v382
          %vm384 = vcmask 257024
          %385 = vst.msk [vmem:[#allocation2] sm:$0xf] %vm384, %v383
          %v386 = vld [vmem:[%s4] sm:$0xf]
          %v387 = vld [vmem:[%s4 + $0x4] sm:$0xf]
          %v388 = vld [vmem:[%s4 + $0x8] sm:$0xf]
          %v389 = vld [vmem:[%s4 + $0xc] sm:$0xf]
          %v394 = vunpack.c.l.b16 %v386
          %v395 = vunpack.c.l.b16 %v387
          %v396 = vunpack.c.l.b16 %v388
          %v397 = vunpack.c.l.b16 %v389
          %v398 = vpack.c.b16 %v395, %v394
          %v399 = vpack.c.b16 %v397, %v396
          %v401 = vsel %vm352, %v398, 0
          %v404 = vsel %vm352, %v399, 0
          %v407 = vsel %vm352, %v383, 0
          %409 = vmatprep.subr.bf16.mxu0 0
          %410 = vmatpush1.bf16.xpose.msra.mxu0 %v407
          %411 = vmatprep.subr.bf16.mxu0 0
          %412 = vmatpush1.bf16.xpose.msra.mxu0 0
          %413 = vmatprep.subr.bf16.mxu0 0
          %414 = vmatpush1.bf16.xpose.msra.mxu0 0
          %415 = vmatprep.subr.bf16.mxu0 0
          %416 = vmatpush1.bf16.xpose.msra.mxu0 0
          %417 = vmatprep.subr.bf16.mxu0 0
          %418 = vmatpush1.bf16.xpose.msra.mxu0 0
          %419 = vmatprep.subr.bf16.mxu0 0
          %420 = vmatpush1.bf16.xpose.msra.mxu0 0
          %421 = vmatprep.subr.bf16.mxu0 0
          %422 = vmatpush1.bf16.xpose.msra.mxu0 0
          %423 = vmatprep.subr.bf16.mxu0 0
          %424 = vmatpush1.bf16.xpose.msra.mxu0 0
          %425 = vmatprep.subr.bf16.mxu0 0
          %426 = vmatpush1.bf16.xpose.msra.mxu0 0
          %427 = vmatprep.subr.bf16.mxu0 0
          %428 = vmatpush1.bf16.xpose.msra.mxu0 0
          %429 = vmatprep.subr.bf16.mxu0 0
          %430 = vmatpush1.bf16.xpose.msra.mxu0 0
          %431 = vmatprep.subr.bf16.mxu0 0
          %432 = vmatpush1.bf16.xpose.msra.mxu0 0
          %433 = vmatprep.subr.bf16.mxu0 0
          %434 = vmatpush1.bf16.xpose.msra.mxu0 0
          %435 = vmatprep.subr.bf16.mxu0 0
          %436 = vmatpush1.bf16.xpose.msra.mxu0 0
          %437 = vmatprep.subr.bf16.mxu0 0
          %438 = vmatpush1.bf16.xpose.msra.mxu0 0
          %439 = vmatprep.subr.bf16.mxu0 0
          %440 = vmatpush1.bf16.xpose.msra.mxu0 0
          %441 = vmatprep.mubr.bf16.mxu0 0
          %442 = vmatmul.mubr.bf16.gmra.mrb[0].mxu0 %v401
          %v443 = vpop.f32.mrb[0].mxu0
          %v444 = vadd.f32 0.0, %v443
          %v445 = vpop.f32.mrb[0].mxu0
          %v446 = vpop.f32.mrb[0].mxu0
          %v447 = vadd.f32 0.0, %v446
          %v448 = vpop.f32.mrb[0].mxu0
          %449 = vmatprep.mubr.bf16.mxu0 0
          %450 = vmatmul.mubr.bf16.gmra.mrb[0].mxu0 %v404
          %v451 = vpop.f32.mrb[0].mxu0
          %v452 = vadd.f32 0.0, %v451
          %v453 = vpop.f32.mrb[0].mxu0
          %v454 = vpop.f32.mrb[0].mxu0
          %v455 = vadd.f32 0.0, %v454
          %v456 = vpop.f32.mrb[0].mxu0
          %457 = vdwg.mxu0
          %v458 = vpack.c.bf16 %v447, %v444
          %v459 = vpack.c.bf16 %v455, %v452
          %vm460 = vcmask 64512
          %461 = vst.msk [vmem:[#allocation3] sm:$0xff] %vm460, %v458
          %462 = vst.msk [vmem:[#allocation3 + $0x8] sm:$0xff] %vm460, %v459
          %v463 = vld [vmem:[%s5] sm:$0xf]
          %v464 = vld [vmem:[%s5 + $0x4] sm:$0xf]
          %v465 = vld [vmem:[%s5 + $0x8] sm:$0xf]
          %v466 = vld [vmem:[%s5 + $0xc] sm:$0xf]
          %v471 = vunpack.c.l.b16 %v463
          %v472 = vunpack.c.l.b16 %v464
          %v473 = vunpack.c.l.b16 %v465
          %v474 = vunpack.c.l.b16 %v466
          %v475 = vpack.c.b16 %v472, %v471
          %v476 = vpack.c.b16 %v474, %v473
          %v478 = vsel %vm352, %v475, 0
          %v481 = vsel %vm352, %v476, 0
          %483 = vmatprep.subr.bf16.mxu0 0
          %484 = vmatpush1.bf16.xpose.msra.mxu0 %v407
          %485 = vmatprep.subr.bf16.mxu0 0
          %486 = vmatpush1.bf16.xpose.msra.mxu0 0
          %487 = vmatprep.subr.bf16.mxu0 0
          %488 = vmatpush1.bf16.xpose.msra.mxu0 0
          %489 = vmatprep.subr.bf16.mxu0 0
          %490 = vmatpush1.bf16.xpose.msra.mxu0 0
          %491 = vmatprep.subr.bf16.mxu0 0
          %492 = vmatpush1.bf16.xpose.msra.mxu0 0
          %493 = vmatprep.subr.bf16.mxu0 0
          %494 = vmatpush1.bf16.xpose.msra.mxu0 0
          %495 = vmatprep.subr.bf16.mxu0 0
          %496 = vmatpush1.bf16.xpose.msra.mxu0 0
          %497 = vmatprep.subr.bf16.mxu0 0
          %498 = vmatpush1.bf16.xpose.msra.mxu0 0
          %499 = vmatprep.subr.bf16.mxu0 0
          %500 = vmatpush1.bf16.xpose.msra.mxu0 0
          %501 = vmatprep.subr.bf16.mxu0 0
          %502 = vmatpush1.bf16.xpose.msra.mxu0 0
          %503 = vmatprep.subr.bf16.mxu0 0
          %504 = vmatpush1.bf16.xpose.msra.mxu0 0
          %505 = vmatprep.subr.bf16.mxu0 0
          %506 = vmatpush1.bf16.xpose.msra.mxu0 0
          %507 = vmatprep.subr.bf16.mxu0 0
          %508 = vmatpush1.bf16.xpose.msra.mxu0 0
          %509 = vmatprep.subr.bf16.mxu0 0
          %510 = vmatpush1.bf16.xpose.msra.mxu0 0
          %511 = vmatprep.subr.bf16.mxu0 0
          %512 = vmatpush1.bf16.xpose.msra.mxu0 0
          %513 = vmatprep.subr.bf16.mxu0 0
          %514 = vmatpush1.bf16.xpose.msra.mxu0 0
          %515 = vmatprep.mubr.bf16.mxu0 0
          %516 = vmatmul.mubr.bf16.gmra.mrb[0].mxu0 %v478
          %v517 = vpop.f32.mrb[0].mxu0
          %v518 = vadd.f32 0.0, %v517
          %v519 = vpop.f32.mrb[0].mxu0
          %v520 = vpop.f32.mrb[0].mxu0
          %v521 = vadd.f32 0.0, %v520
          %v522 = vpop.f32.mrb[0].mxu0
          %523 = vmatprep.mubr.bf16.mxu0 0
          %524 = vmatmul.mubr.bf16.gmra.mrb[0].mxu0 %v481
          %v525 = vpop.f32.mrb[0].mxu0
          %v526 = vadd.f32 0.0, %v525
          %v527 = vpop.f32.mrb[0].mxu0
          %v528 = vpop.f32.mrb[0].mxu0
          %v529 = vadd.f32 0.0, %v528
          %v530 = vpop.f32.mrb[0].mxu0
          %531 = vdwg.mxu0
          %v532 = vpack.c.bf16 %v521, %v518
          %v533 = vpack.c.bf16 %v529, %v526
          %534 = vst.msk [vmem:[#allocation4] sm:$0xff] %vm460, %v532
          %535 = vst.msk [vmem:[#allocation4 + $0x8] sm:$0xff] %vm460, %v533
        $region52: #{tpu_custom_call.1} parent=47 // pred_fallthru
          _
        %v536 = vld [vmem:[#allocation2] sm:$0xf]
        %v537 = vld [vmem:[%s345] sm:$0xf]
        %v538 = vld [vmem:[%s345 + $0x4] sm:$0xf]
        %v539 = vld [vmem:[%s345 + $0x8] sm:$0xf]
        %v540 = vld [vmem:[%s345 + $0xc] sm:$0xf]
        %v545 = vunpack.c.l.b16 %v537
        %v546 = vunpack.c.l.b16 %v538
        %v547 = vunpack.c.l.b16 %v539
        %v548 = vunpack.c.l.b16 %v540
        %v549 = vpack.c.b16 %v546, %v545
        %v550 = vpack.c.b16 %v548, %v547
        %vm553 = vcmask 261120
        %v555 = vsel %vm553, %v536, 0
        %557 = vmatprep.subr.bf16.mxu0 0
        %558 = vmatpush1.bf16.msra.mxu0 %v549
        %559 = vmatprep.subr.bf16.mxu0 0
        %560 = vmatpush1.bf16.msra.mxu0 %v550
        %561 = vmatprep.subr.bf16.mxu0 0
        %562 = vmatpush1.bf16.msra.mxu0 0
        %563 = vmatprep.subr.bf16.mxu0 0
        %564 = vmatpush1.bf16.msra.mxu0 0
        %565 = vmatprep.subr.bf16.mxu0 0
        %566 = vmatpush1.bf16.msra.mxu0 0
        %567 = vmatprep.subr.bf16.mxu0 0
        %568 = vmatpush1.bf16.msra.mxu0 0
        %569 = vmatprep.subr.bf16.mxu0 0
        %570 = vmatpush1.bf16.msra.mxu0 0
        %571 = vmatprep.subr.bf16.mxu0 0
        %572 = vmatpush1.bf16.msra.mxu0 0
        %573 = vmatprep.subr.bf16.mxu0 0
        %574 = vmatpush1.bf16.msra.mxu0 0
        %575 = vmatprep.subr.bf16.mxu0 0
        %576 = vmatpush1.bf16.msra.mxu0 0
        %577 = vmatprep.subr.bf16.mxu0 0
        %578 = vmatpush1.bf16.msra.mxu0 0
        %579 = vmatprep.subr.bf16.mxu0 0
        %580 = vmatpush1.bf16.msra.mxu0 0
        %581 = vmatprep.subr.bf16.mxu0 0
        %582 = vmatpush1.bf16.msra.mxu0 0
        %583 = vmatprep.subr.bf16.mxu0 0
        %584 = vmatpush1.bf16.msra.mxu0 0
        %585 = vmatprep.subr.bf16.mxu0 0
        %586 = vmatpush1.bf16.msra.mxu0 0
        %587 = vmatprep.subr.bf16.mxu0 0
        %588 = vmatpush1.bf16.msra.mxu0 0
        %589 = vmatprep.mubr.bf16.mxu0 0
        %590 = vmatmul.mubr.bf16.gmra.mrb[0].mxu0 %v555
        %v591 = vpop.f32.mrb[0].mxu0
        %v592 = vadd.f32 0.0, %v591
        %v593 = vpop.f32.mrb[0].mxu0
        %v594 = vpop.f32.mrb[0].mxu0
        %v595 = vpop.f32.mrb[0].mxu0
        %596 = vdwg.mxu0
        %v597 = vmul.f32 %v592, 0.25
        %v598 = vpack.c.bf16 %v597, %v597
        %s599 = smul.u32 %s31, 16
        %s600 = sshra.s32 %s599, 4
        %s601 = sand.u32 %s599, 15
        %s602 = smul.addr %s600, 8
        %s603 = scalar_lea.vmem [#allocation3], %s602
        %v604 = vld [vmem:[%s603] sm:$0xff]
        %vm605 = vcmask 130048
        %v607 = vsel %vm605, %v598, 0
        %609 = vmatprep.subr.bf16.mxu0 0
        %610 = vmatpush1.bf16.msra.mxu0 %v604
        %611 = vmatprep.subr.bf16.mxu0 0
        %612 = vmatpush1.bf16.msra.mxu0 0
        %613 = vmatprep.subr.bf16.mxu0 0
        %614 = vmatpush1.bf16.msra.mxu0 0
        %615 = vmatprep.subr.bf16.mxu0 0
        %616 = vmatpush1.bf16.msra.mxu0 0
        %617 = vmatprep.subr.bf16.mxu0 0
        %618 = vmatpush1.bf16.msra.mxu0 0
        %619 = vmatprep.subr.bf16.mxu0 0
        %620 = vmatpush1.bf16.msra.mxu0 0
        %621 = vmatprep.subr.bf16.mxu0 0
        %622 = vmatpush1.bf16.msra.mxu0 0
        %623 = vmatprep.subr.bf16.mxu0 0
        %624 = vmatpush1.bf16.msra.mxu0 0
        %625 = vmatprep.subr.bf16.mxu0 0
        %626 = vmatpush1.bf16.msra.mxu0 0
        %627 = vmatprep.subr.bf16.mxu0 0
        %628 = vmatpush1.bf16.msra.mxu0 0
        %629 = vmatprep.subr.bf16.mxu0 0
        %630 = vmatpush1.bf16.msra.mxu0 0
        %631 = vmatprep.subr.bf16.mxu0 0
        %632 = vmatpush1.bf16.msra.mxu0 0
        %633 = vmatprep.subr.bf16.mxu0 0
        %634 = vmatpush1.bf16.msra.mxu0 0
        %635 = vmatprep.subr.bf16.mxu0 0
        %636 = vmatpush1.bf16.msra.mxu0 0
        %637 = vmatprep.subr.bf16.mxu0 0
        %638 = vmatpush1.bf16.msra.mxu0 0
        %639 = vmatprep.subr.bf16.mxu0 0
        %640 = vmatpush1.bf16.msra.mxu0 0
        %641 = vmatprep.mubr.bf16.mxu0 0
        %642 = vmatmul.mubr.bf16.gmra.mrb[0].mxu0 %v607
        %v643 = vpop.f32.mrb[0].mxu0
        %v644 = vadd.f32 0.0, %v643
        %v645 = vpop.f32.mrb[0].mxu0
        %v646 = vpop.f32.mrb[0].mxu0
        %v647 = vpop.f32.mrb[0].mxu0
        %648 = vdwg.mxu0
        %vm649 = vcmask 64512
        %v650 = vsel %vm649, %v644, -inf
        %651 = vmax.xlane.f32.xlu0 %v650
        %v652 = vpop.xlane.xlu0 %651
        %v653 = vsub.f32 %v644, %v652
        %v654 = vmul.f32 %v653, 1.442695
        %v655 = vpow.pop %v654
        %v656 = vsel %vm649, %v655, 0.0
        %657 = vadd.xlane.f32.xlu0 %v656
        %v658 = vpop.xlane.xlu0 %657
        %v659 = vrcp.pop %v658
        %v660 = vmul.f32 1.0, %v659
        %v661 = vmul.f32 %v655, %v660
        %662 = vst.msk [vmem:[%s336] sm:$0xff] %vm649, %v661
        %s663 = smul.addr %s600, 8
        %s664 = scalar_lea.vmem [#allocation4], %s663
        %v665 = vld [vmem:[%s664] sm:$0xff]
        %v666 = vpack.c.bf16 %v661, %v661
        %v668 = vsel %vm649, %v665, 0
        %v671 = vsel %vm649, %v666, 0
        %673 = vmatprep.subr.bf16.mxu0 0
        %674 = vmatpush1.bf16.xpose.msra.mxu0 %v671
        %675 = vmatprep.subr.bf16.mxu0 0
        %676 = vmatpush1.bf16.xpose.msra.mxu0 0
        %677 = vmatprep.subr.bf16.mxu0 0
        %678 = vmatpush1.bf16.xpose.msra.mxu0 0
        %679 = vmatprep.subr.bf16.mxu0 0
        %680 = vmatpush1.bf16.xpose.msra.mxu0 0
        %681 = vmatprep.subr.bf16.mxu0 0
        %682 = vmatpush1.bf16.xpose.msra.mxu0 0
        %683 = vmatprep.subr.bf16.mxu0 0
        %684 = vmatpush1.bf16.xpose.msra.mxu0 0
        %685 = vmatprep.subr.bf16.mxu0 0
        %686 = vmatpush1.bf16.xpose.msra.mxu0 0
        %687 = vmatprep.subr.bf16.mxu0 0
        %688 = vmatpush1.bf16.xpose.msra.mxu0 0
        %689 = vmatprep.subr.bf16.mxu0 0
        %690 = vmatpush1.bf16.xpose.msra.mxu0 0
        %691 = vmatprep.subr.bf16.mxu0 0
        %692 = vmatpush1.bf16.xpose.msra.mxu0 0
        %693 = vmatprep.subr.bf16.mxu0 0
        %694 = vmatpush1.bf16.xpose.msra.mxu0 0
        %695 = vmatprep.subr.bf16.mxu0 0
        %696 = vmatpush1.bf16.xpose.msra.mxu0 0
        %697 = vmatprep.subr.bf16.mxu0 0
        %698 = vmatpush1.bf16.xpose.msra.mxu0 0
        %699 = vmatprep.subr.bf16.mxu0 0
        %700 = vmatpush1.bf16.xpose.msra.mxu0 0
        %701 = vmatprep.subr.bf16.mxu0 0
        %702 = vmatpush1.bf16.xpose.msra.mxu0 0
        %703 = vmatprep.subr.bf16.mxu0 0
        %704 = vmatpush1.bf16.xpose.msra.mxu0 0
        %705 = vmatprep.mubr.bf16.mxu0 0
        %706 = vmatmul.mubr.bf16.gmra.mrb[0].mxu0 %v668
        %v707 = vpop.f32.mrb[0].mxu0
        %v708 = vadd.f32 0.0, %v707
        %v709 = vpop.f32.mrb[0].mxu0
        %v710 = vpop.f32.mrb[0].mxu0
        %v711 = vadd.f32 0.0, %v710
        %v712 = vpop.f32.mrb[0].mxu0
        %713 = vdwg.mxu0
        %v714 = vpack.c.bf16 %v711, %v708
        %s715 = smul.addr %s600, 8
        %s716 = scalar_lea.vmem [#allocation5], %s715
        %717 = vst.msk [vmem:[%s716] sm:$0xff] %vm649, %v714
        %p718 = scmp.eq.s32.totalorder %s31, 1
        // Predicated region
        $region53: #{tpu_custom_call.1} parent=47 // pred_check
          %p719 = pneg %p718
        $region54: #{tpu_custom_call.1} parent=47 // pred_check_branch
          %721 = sbr.rel (%p719) target = $region56
        $region55: #{tpu_custom_call.1} parent=47 // pred_region
          %v722 = vld [vmem:[#allocation5] sm:$0xff]
          %v723 = vld [vmem:[#allocation5 + $0x8] sm:$0xff]
          %v724 = vld [vmem:[%s6] sm:$0xf]
          %v725 = vld [vmem:[%s6 + $0x4] sm:$0xf]
          %v726 = vld [vmem:[%s6 + $0x8] sm:$0xf]
          %v727 = vld [vmem:[%s6 + $0xc] sm:$0xf]
          %v728 = vld [vmem:[%s340] sm:$0xff]
          %729 = vxpose.xlu0.c.b16.start [1/8] %v722, 128
          %730 = vxpose.xlu0.c.b16.cont [2/8] %v723, 128
          %731 = vxpose.xlu0.c.b16.cont [3/8] 0, 128
          %732 = vxpose.xlu0.c.b16.cont [4/8] 0, 128
          %733 = vxpose.xlu0.c.b16.cont [5/8] 0, 128
          %734 = vxpose.xlu0.c.b16.cont [6/8] 0, 128
          %735 = vxpose.xlu0.c.b16.cont [7/8] 0, 128
          %736 = vxpose.xlu0.c.b16.end [8/8] 0, 128
          %v737 = vpop.trf.xlu0
          %v738 = vpop.trf.xlu0
          %v739 = vpop.trf.xlu0
          %v740 = vpop.trf.xlu0
          %v741 = vpop.trf.xlu0
          %v742 = vpop.trf.xlu0
          %v743 = vpop.trf.xlu0
          %v744 = vpop.trf.xlu0
          %v749 = vunpack.c.l.b16 %v724
          %v750 = vunpack.c.l.b16 %v725
          %v751 = vunpack.c.l.b16 %v726
          %v752 = vunpack.c.l.b16 %v727
          %v753 = vpack.c.b16 %v750, %v749
          %v754 = vpack.c.b16 %v752, %v751
          %v758 = vsel %vm553, %v737, 0
          %760 = vmatprep.subr.bf16.mxu0 0
          %761 = vmatpush1.bf16.msra.mxu0 %v753
          %762 = vmatprep.subr.bf16.mxu0 0
          %763 = vmatpush1.bf16.msra.mxu0 %v754
          %764 = vmatprep.subr.bf16.mxu0 0
          %765 = vmatpush1.bf16.msra.mxu0 0
          %766 = vmatprep.subr.bf16.mxu0 0
          %767 = vmatpush1.bf16.msra.mxu0 0
          %768 = vmatprep.subr.bf16.mxu0 0
          %769 = vmatpush1.bf16.msra.mxu0 0
          %770 = vmatprep.subr.bf16.mxu0 0
          %771 = vmatpush1.bf16.msra.mxu0 0
          %772 = vmatprep.subr.bf16.mxu0 0
          %773 = vmatpush1.bf16.msra.mxu0 0
          %774 = vmatprep.subr.bf16.mxu0 0
          %775 = vmatpush1.bf16.msra.mxu0 0
          %776 = vmatprep.subr.bf16.mxu0 0
          %777 = vmatpush1.bf16.msra.mxu0 0
          %778 = vmatprep.subr.bf16.mxu0 0
          %779 = vmatpush1.bf16.msra.mxu0 0
          %780 = vmatprep.subr.bf16.mxu0 0
          %781 = vmatpush1.bf16.msra.mxu0 0
          %782 = vmatprep.subr.bf16.mxu0 0
          %783 = vmatpush1.bf16.msra.mxu0 0
          %784 = vmatprep.subr.bf16.mxu0 0
          %785 = vmatpush1.bf16.msra.mxu0 0
          %786 = vmatprep.subr.bf16.mxu0 0
          %787 = vmatpush1.bf16.msra.mxu0 0
          %788 = vmatprep.subr.bf16.mxu0 0
          %789 = vmatpush1.bf16.msra.mxu0 0
          %790 = vmatprep.subr.bf16.mxu0 0
          %791 = vmatpush1.bf16.msra.mxu0 0
          %792 = vmatprep.mubr.bf16.mxu0 0
          %793 = vmatmul.mubr.bf16.gmra.mrb[0].mxu0 %v758
          %v794 = vpop.f32.mrb[0].mxu0
          %v795 = vadd.f32 %v728, %v794
          %v796 = vpop.f32.mrb[0].mxu0
          %v797 = vpop.f32.mrb[0].mxu0
          %v798 = vpop.f32.mrb[0].mxu0
          %799 = vdwg.mxu0
          %800 = vst.msk [vmem:[%s329] sm:$0xff] %vm553, %v795
        $region56: #{tpu_custom_call.1} parent=47 // pred_fallthru
          _
        %s801 = sand.u32 %s203, 1
        %s802 = scalar_lea.sflag [#allocation7], %s801
        %s803 = sand.u32 %s203, 1
        %s804 = smul.addr %s803, 8
        %s805 = scalar_lea.vmem [#allocation6], %s804
        %s806 = sand.u32 %s231, 1
        %s807 = scalar_lea.sflag [#allocation9], %s806
        %s808 = sand.u32 %s231, 1
        %s809 = smul.addr %s808, 8
        %s810 = scalar_lea.vmem [#allocation8], %s809
        // Predicated region
        $region57: #{tpu_custom_call.1} parent=47 // pred_check
          %p811 = pneg %p213
        $region58: #{tpu_custom_call.1} parent=47 // pred_check_branch
          %813 = sbr.rel (%p811) target = $region60
        $region59: #{tpu_custom_call.1} parent=47 // pred_region
          %s815 = ssub.s32 128, 128
          %816 = vsyncadd %s802, %s815
          %s817 = smul.addr %s30, 128
          %s818 = scalar_lea.hbm %s7, %s817
          %s820 = sshll.u32 %s805, 4
          %s821 = int_to_ptr.vmem [resolvable:$true] %s820
          %823 = dma.vmem_to_hbm [thread:$0]  %s821, 128, %s818, %s802
        $region60: #{tpu_custom_call.1} parent=47 // pred_fallthru
          _
        // Predicated region
        $region61: #{tpu_custom_call.1} parent=47 // pred_check
          %p824 = pneg %p241
        $region62: #{tpu_custom_call.1} parent=47 // pred_check_branch
          %826 = sbr.rel (%p824) target = $region64
        $region63: #{tpu_custom_call.1} parent=47 // pred_region
          %s828 = ssub.s32 128, 128
          %829 = vsyncadd %s807, %s828
          %s830 = smul.addr %s30, 2
          %s831 = sadd.s32 %s31, %s830
          %s832 = smul.addr %s831, 128
          %s833 = scalar_lea.hbm %s8, %s832
          %s835 = sshll.u32 %s810, 4
          %s836 = int_to_ptr.vmem [resolvable:$true] %s835
          %838 = dma.vmem_to_hbm [thread:$0]  %s836, 128, %s833, %s807
        $region64: #{tpu_custom_call.1} parent=47 // pred_fallthru
          _
      $region48: #{tpu_custom_call.1} parent=5 // pred_fallthru
        _
      %p839 = scmp.le.s32.totalorder 2, %s21
      // Predicated region
      $region65: #{tpu_custom_call.1} parent=5 // pred_check
        %p840 = pneg %p839
      $region66: #{tpu_custom_call.1} parent=5 // pred_check_branch
        %842 = sbr.rel (%p840) target = $region68
      $region67: #{tpu_custom_call.1} parent=5 // pred_region
        %s843 = ssub.s32 %s21, 2
        // Predicated region
        $region69: #{tpu_custom_call.1} parent=67 // pred_check
          %p844 = pneg %p219
        $region70: #{tpu_custom_call.1} parent=67 // pred_check_branch
          %846 = sbr.rel (%p844) target = $region72
        $region71: #{tpu_custom_call.1} parent=67 // pred_region
          %s847 = sand.u32 %s204, 1
          %s848 = scalar_lea.sflag [#allocation7], %s847
          %s849 = sand.u32 %s204, 1
          %s850 = smul.addr %s849, 8
          %s851 = scalar_lea.vmem [#allocation6], %s850
          %852 = dma.done %s848, 128
        $region72: #{tpu_custom_call.1} parent=67 // pred_fallthru
          _
        // Predicated region
        $region73: #{tpu_custom_call.1} parent=67 // pred_check
          %p853 = pneg %p247
        $region74: #{tpu_custom_call.1} parent=67 // pred_check_branch
          %855 = sbr.rel (%p853) target = $region76
        $region75: #{tpu_custom_call.1} parent=67 // pred_region
          %s856 = sand.u32 %s232, 1
          %s857 = scalar_lea.sflag [#allocation9], %s856
          %s858 = sand.u32 %s232, 1
          %s859 = smul.addr %s858, 8
          %s860 = scalar_lea.vmem [#allocation8], %s859
          %861 = dma.done %s857, 128
        $region76: #{tpu_custom_call.1} parent=67 // pred_fallthru
          _
      $region68: #{tpu_custom_call.1} parent=5 // pred_fallthru
        _
    $region6: #{tpu_custom_call.1} parent=1 // loop_footer
      %s25 = sadd.s32 1, %s21
    $region7: #{tpu_custom_call.1} parent=1 // loop_footer_branch
      %20 = sbr.rel target = $region3
    $region8: #{tpu_custom_call.1} parent=1 // loop_exit
      _
    %862 = vsyncpa [#allocation7], 1
    %s863 = scalar_lea.sflag [#allocation7], 1
    %864 = vsyncpa %s863, 1
    %865 = vsyncpa [#allocation9], 1
    %s866 = scalar_lea.sflag [#allocation9], 1
    %867 = vsyncpa %s866, 1

</llo_original>
